<compile_context>
chip_gen: v7x
topology: tpu7x:2x2x1
jax: 0.10.0
libtpu: 0.0.40
codegen_flags: <defaults>
</compile_context>

<pallas_src>
import jax
import jax.numpy as jnp
from jax.experimental import pallas as pl
from jax.experimental.pallas import tpu as pltpu


# ----------------------------------------------------------------------------
# helpers
# ----------------------------------------------------------------------------
def _round_up(x, m):
    return (x + m - 1) // m * m


def _pick_rows(mp, cap):
    """Largest multiple-of-8 divisor of mp that is <= cap (mp itself if small)."""
    if mp <= cap:
        return mp
    best = 8
    d = 8
    while d <= cap:
        if mp % d == 0:
            best = d
        d += 8
    return best


def extract_patches(x_nhwc, kh, kw, stride, pad, pad_value=0.0):
    """im2col. Returns (N*OH*OW, kh*kw, C) patches plus output spatial dims."""
    N, H, W, C = x_nhwc.shape
    xp = jnp.pad(x_nhwc, ((0, 0), (pad, pad), (pad, pad), (0, 0)),
                 constant_values=pad_value)
    OH = (H + 2 * pad - kh) // stride + 1
    OW = (W + 2 * pad - kw) // stride + 1
    cols = []
    for i in range(kh):
        for j in range(kw):
            cols.append(
                xp[:, i:i + (OH - 1) * stride + 1:stride,
                      j:j + (OW - 1) * stride + 1:stride, :])
    patches = jnp.stack(cols, axis=3)            # (N, OH, OW, kh*kw, C)
    return patches.reshape(N * OH * OW, kh * kw, C), (N, OH, OW)


def extract_taps_first(x_nhwc, kh, kw, stride, pad, pad_value):
    """Like extract_patches but taps on the leading (major) axis: (KK, M, C)."""
    N, H, W, C = x_nhwc.shape
    xp = jnp.pad(x_nhwc, ((0, 0), (pad, pad), (pad, pad), (0, 0)),
                 constant_values=pad_value)
    OH = (H + 2 * pad - kh) // stride + 1
    OW = (W + 2 * pad - kw) // stride + 1
    cols = []
    for i in range(kh):
        for j in range(kw):
            cols.append(
                xp[:, i:i + (OH - 1) * stride + 1:stride,
                      j:j + (OW - 1) * stride + 1:stride, :])
    taps = jnp.stack(cols, axis=0)               # (KK, N, OH, OW, C)
    return taps.reshape(kh * kw, N * OH * OW, C), (N, OH, OW)


# ----------------------------------------------------------------------------
# Pallas kernel #1: tiled matmul (bf16 operands, f32 accumulation).
# The "_stats" variant also emits per-column sum and sum-of-squares partials
# from the epilogue so BatchNorm batch statistics need no extra HBM pass.
# ----------------------------------------------------------------------------
def _matmul_kernel(a_ref, b_ref, o_ref, acc_ref):
    @pl.when(pl.program_id(2) == 0)
    def _():
        acc_ref[...] = jnp.zeros_like(acc_ref)

    acc_ref[...] += jnp.dot(a_ref[...], b_ref[...],
                            preferred_element_type=jnp.float32)

    @pl.when(pl.program_id(2) == pl.num_programs(2) - 1)
    def _():
        o_ref[...] = acc_ref[...].astype(o_ref.dtype)


def _matmul_stats_kernel(a_ref, b_ref, o_ref, sum_ref, sq_ref, acc_ref):
    @pl.when(pl.program_id(2) == 0)
    def _():
        acc_ref[...] = jnp.zeros_like(acc_ref)

    acc_ref[...] += jnp.dot(a_ref[...], b_ref[...],
                            preferred_element_type=jnp.float32)

    @pl.when(pl.program_id(2) == pl.num_programs(2) - 1)
    def _():
        acc = acc_ref[...]
        o_ref[...] = acc.astype(o_ref.dtype)
        s = jnp.sum(acc, axis=0, keepdims=True)            # per-column sum
        q = jnp.sum(acc * acc, axis=0, keepdims=True)      # per-column sumsq
        # broadcast to 8 sublanes to keep an (8, tn)-aligned output block;
        # the wrapper divides the final reduction by 8 (exact in f32).
        sum_ref[...] = jnp.broadcast_to(s, sum_ref.shape)
        sq_ref[...] = jnp.broadcast_to(q, sq_ref.shape)


def pallas_matmul(a, b, with_stats=False, keep_padded=False):
    M, K = a.shape
    K2, N = b.shape
    assert K == K2

    # --- adaptive tile selection -------------------------------------------
    Mp0 = _round_up(M, 16)                       # bf16 sublane pack
    if Mp0 >= 256:
        tm, Mp = 256, _round_up(M, 256)
    else:
        tm, Mp = Mp0, Mp0
    Np = _round_up(N, 128)
    tn = 256 if Np % 256 == 0 else 128
    Kp = _round_up(K, 128)
    if Kp <= 768:
        tk = Kp                                  # single K step, no padding waste
    else:
        tk = 128
        for cand in (512, 384, 256):
            if Kp % cand == 0:
                tk = cand
                break

    a_p = jnp.pad(a.astype(jnp.bfloat16), ((0, Mp - M), (0, Kp - K)))
    b_p = jnp.pad(b.astype(jnp.bfloat16), ((0, Kp - K), (0, Np - N)))

    grid = (Mp // tm, Np // tn, Kp // tk)
    in_specs = [pl.BlockSpec((tm, tk), lambda i, j, k: (i, k)),
                pl.BlockSpec((tk, tn), lambda i, j, k: (k, j))]
    out_spec = pl.BlockSpec((tm, tn), lambda i, j, k: (i, j))
    cparams = pltpu.CompilerParams(
        dimension_semantics=("parallel", "parallel", "arbitrary"))

    if with_stats:
        nb = Mp // tm
        stat_spec = pl.BlockSpec((8, tn), lambda i, j, k: (i, j))
        out, s_part, q_part = pl.pallas_call(
            _matmul_stats_kernel,
            out_shape=(jax.ShapeDtypeStruct((Mp, Np), jnp.float32),
                       jax.ShapeDtypeStruct((nb * 8, Np), jnp.float32),
                       jax.ShapeDtypeStruct((nb * 8, Np), jnp.float32)),
            grid_spec=pltpu.PrefetchScalarGridSpec(
                num_scalar_prefetch=0, grid=grid,
                in_specs=in_specs,
                out_specs=(out_spec, stat_spec, stat_spec),
                scratch_shapes=[pltpu.VMEM((tm, tn), jnp.float32)]),
            compiler_params=cparams,
        )(a_p, b_p)
        colsum = jnp.sum(s_part, axis=0) / 8.0
        colsq = jnp.sum(q_part, axis=0) / 8.0
        if not keep_padded:
            out = out[:M, :N]
        return out, colsum, colsq

    out = pl.pallas_call(
        _matmul_kernel,
        out_shape=jax.ShapeDtypeStruct((Mp, Np), jnp.float32),
        grid_spec=pltpu.PrefetchScalarGridSpec(
            num_scalar_prefetch=0, grid=grid,
            in_specs=in_specs, out_specs=out_spec,
            scratch_shapes=[pltpu.VMEM((tm, tn), jnp.float32)]),
        compiler_params=cparams,
    )(a_p, b_p)
    return out if keep_padded else out[:M, :N]


def conv2d(x_nhwc, w_oihw, stride, pad):
    """Conv (PyTorch weight layout Cout,Cin,KH,KW, no bias) as a Pallas matmul.
    Returns (padded flat output (Mp, Np), true M, output dims, (colsum, colsq))."""
    Cout, Cin, KH, KW = w_oihw.shape
    xb = x_nhwc.astype(jnp.bfloat16)
    if KH == 1 and KW == 1 and pad == 0:
        # 1x1 conv: no im2col, direct strided slice.
        a4 = xb[:, ::stride, ::stride, :]
        N_, OH, OW, _ = a4.shape
        a = a4.reshape(N_ * OH * OW, Cin)
        dims = (N_, OH, OW)
    else:
        patches, dims = extract_patches(xb, KH, KW, stride, pad)
        a = patches.reshape(patches.shape[0], KH * KW * Cin)
    b = jnp.transpose(w_oihw, (2, 3, 1, 0)).reshape(KH * KW * Cin, Cout)
    b = b.astype(jnp.bfloat16)
    out_pad, colsum, colsq = pallas_matmul(a, b, with_stats=True, keep_padded=True)
    return out_pad, a.shape[0], dims, (colsum, colsq)


# ----------------------------------------------------------------------------
# Pallas kernel #2: fused BN affine (+ optional residual) (+ optional ReLU)
# ----------------------------------------------------------------------------
def _bn_relu_kernel(x_ref, s_ref, b_ref, o_ref):
    o_ref[...] = jnp.maximum(x_ref[...] * s_ref[...] + b_ref[...], 0.0)


def _bn_plain_kernel(x_ref, s_ref, b_ref, o_ref):
    o_ref[...] = x_ref[...] * s_ref[...] + b_ref[...]


def _bn_res_relu_kernel(x_ref, s_ref, b_ref, r_ref, o_ref):
    o_ref[...] = jnp.maximum(
        x_ref[...] * s_ref[...] + b_ref[...] + r_ref[...], 0.0)


def bn_affine_apply(x_pad, scale, shift, M, C, residual=None, relu=True):
    """x_pad is the tile-padded matmul output (Mp, Cp); result sliced to (M, C)."""
    Mp, Cp = x_pad.shape
    s_p = jnp.pad(scale.reshape(1, C).astype(jnp.float32), ((0, 0), (0, Cp - C)))
    b_p = jnp.pad(shift.reshape(1, C).astype(jnp.float32), ((0, 0), (0, Cp - C)))
    bm = _pick_rows(Mp, 1024)                     # big row blocks; HBM-bound kernel
    row_spec = pl.BlockSpec((bm, Cp), lambda i: (i, 0))
    vec_spec = pl.BlockSpec((1, Cp), lambda i: (0, 0))

    if residual is not None:
        r_p = jnp.pad(residual.astype(jnp.float32),
                      ((0, Mp - residual.shape[0]), (0, Cp - residual.shape[1])))
        kernel = _bn_res_relu_kernel              # residual path always ReLUs
        args = (x_pad, s_p, b_p, r_p)
        in_specs = [row_spec, vec_spec, vec_spec, row_spec]
    else:
        kernel = _bn_relu_kernel if relu else _bn_plain_kernel
        args = (x_pad, s_p, b_p)
        in_specs = [row_spec, vec_spec, vec_spec]

    out = pl.pallas_call(
        kernel,
        out_shape=jax.ShapeDtypeStruct((Mp, Cp), jnp.float32),
        grid=(Mp // bm,),
        in_specs=in_specs,
        out_specs=row_spec,
        compiler_params=pltpu.CompilerParams(dimension_semantics=("parallel",)),
    )(*args)
    return out[:M, :C]


def batchnorm(x_pad, stats, M, C, gamma, beta, residual=None, relu=True, eps=1e-5):
    """BatchNorm2d with training-mode batch statistics (as a default PyTorch
    forward pass would use), fused with optional residual add and ReLU.
    Stats come from the matmul epilogue; only tiny (C,)-sized math stays in JAX."""
    # TODO(synk): eval-mode running_mean/running_var tracking is not modelled.
    colsum, colsq = stats
    mean = colsum[:C] / float(M)
    var = jnp.maximum(colsq[:C] / float(M) - mean * mean, 0.0)   # biased, as PyTorch
    scale = gamma / jnp.sqrt(var + eps)
    shift = beta - mean * scale
    return bn_affine_apply(x_pad, scale, shift, M, C, residual=residual, relu=relu)


# ----------------------------------------------------------------------------
# Pallas kernel #3: maxpool — taps on the leading (major) axis, reduced in-kernel
# ----------------------------------------------------------------------------
def _maxpool_kernel(x_ref, o_ref):
    o_ref[...] = jnp.max(x_ref[...], axis=0)


def pallas_maxpool(x_nhwc, kernel=3, stride=2, pad=1):
    taps, dims = extract_taps_first(x_nhwc, kernel, kernel, stride, pad,
                                    pad_value=-jnp.inf)
    KK, M, C = taps.shape
    Mp, Cp = _round_up(M, 8), _round_up(C, 128)
    p = jnp.pad(taps, ((0, 0), (0, Mp - M), (0, Cp - C)))
    bm = _pick_rows(Mp, 1024)
    out = pl.pallas_call(
        _maxpool_kernel,
        out_shape=jax.ShapeDtypeStruct((Mp, Cp), jnp.float32),
        grid=(Mp // bm,),
        in_specs=[pl.BlockSpec((KK, bm, Cp), lambda i: (0, i, 0))],
        out_specs=pl.BlockSpec((bm, Cp), lambda i: (i, 0)),
        compiler_params=pltpu.CompilerParams(dimension_semantics=("parallel",)),
    )(p)
    return out[:M, :C], dims


# ----------------------------------------------------------------------------
# BasicBlock (expansion = 1) and full ResNet forward
# ----------------------------------------------------------------------------
def basic_block(x2d, dims, bp):
    N, H, W = dims
    in_ch, out_ch, stride = bp["in_ch"], bp["out_ch"], bp["stride"]
    x_nhwc = x2d.reshape(N, H, W, in_ch)

    y_pad, M1, dims1, st1 = conv2d(x_nhwc, bp["conv1_w"], stride, 1)
    y = batchnorm(y_pad, st1, M1, out_ch, bp["bn1_gamma"], bp["bn1_beta"], relu=True)

    N1, H1, W1 = dims1
    y2_pad, M2, dims2, st2 = conv2d(y.reshape(N1, H1, W1, out_ch), bp["conv2_w"], 1, 1)

    if stride != 1 or in_ch != out_ch:
        sc_pad, Ms, _, sts = conv2d(x_nhwc, bp["down_w"], stride, 0)
        sc = batchnorm(sc_pad, sts, Ms, out_ch,
                       bp["down_gamma"], bp["down_beta"], relu=False)
    else:
        sc = x2d

    out = batchnorm(y2_pad, st2, M2, out_ch, bp["bn2_gamma"], bp["bn2_beta"],
                    residual=sc, relu=True)
    return out, dims2


def resnet_forward(params, x_nchw):
    # layout: NCHW (PyTorch) input -> NHWC internally
    x = jnp.transpose(x_nchw, (0, 2, 3, 1)).astype(jnp.float32)

    # stem: conv7x7/s2/p3 -> BN -> ReLU -> maxpool3x3/s2/p1
    y_pad, M, dims, st = conv2d(x, params["conv1_w"], stride=2, pad=3)
    y = batchnorm(y_pad, st, M, 64, params["bn1_gamma"], params["bn1_beta"], relu=True)
    N, H, W = dims
    y, dims = pallas_maxpool(y.reshape(N, H, W, 64), 3, 2, 1)

    # residual stages
    for blocks in params["layers"]:
        for bp in blocks:
            y, dims = basic_block(y, dims, bp)

    # adaptive avg pool to (1,1) + flatten  (tiny reduction, JAX glue)
    N, H, W = dims
    C = y.shape[-1]
    pooled = jnp.mean(y.reshape(N, H * W, C), axis=1)          # (N, 512)

    # fc (Pallas matmul, bf16 operands) + bias (glue)
    logits = pallas_matmul(pooled.astype(jnp.bfloat16),
                           params["fc_w"].T.astype(jnp.bfloat16))
    return logits + params["fc_b"][None, :]


# ----------------------------------------------------------------------------
# deterministic parameter construction (BasicBlock, num_blocks=[1,1,1,1])
# ----------------------------------------------------------------------------
def init_resnet_params(key, num_blocks=(1, 1, 1, 1), num_classes=5):
    keys = iter(jax.random.split(key, 256))

    def conv_w(cout, cin, k):
        return jax.random.normal(next(keys), (cout, cin, k, k), jnp.float32) * 0.05

    params = {
        "conv1_w": conv_w(64, 3, 7),
        "bn1_gamma": jnp.ones(64, jnp.float32),
        "bn1_beta": jnp.zeros(64, jnp.float32),
    }

    in_ch = 64
    layers = []
    for ch, nb, st in zip((64, 128, 256, 512), num_blocks, (1, 2, 2, 2)):
        blocks = []
        strides = [st] + [1] * (nb - 1)
        for s in strides:
            bp = {
                "in_ch": in_ch, "out_ch": ch, "stride": s,
                "conv1_w": conv_w(ch, in_ch, 3),
                "bn1_gamma": jnp.ones(ch, jnp.float32),
                "bn1_beta": jnp.zeros(ch, jnp.float32),
                "conv2_w": conv_w(ch, ch, 3),
                "bn2_gamma": jnp.ones(ch, jnp.float32),
                "bn2_beta": jnp.zeros(ch, jnp.float32),
            }
            if s != 1 or in_ch != ch:
                bp["down_w"] = conv_w(ch, in_ch, 1)
                bp["down_gamma"] = jnp.ones(ch, jnp.float32)
                bp["down_beta"] = jnp.zeros(ch, jnp.float32)
            blocks.append(bp)
            in_ch = ch
        layers.append(blocks)
    params["layers"] = layers

    params["fc_w"] = jax.random.normal(next(keys), (num_classes, 512), jnp.float32) * 0.05
    params["fc_b"] = jnp.zeros(num_classes, jnp.float32)
    return params


# ----------------------------------------------------------------------------
if __name__ == "__main__":
    key = jax.random.PRNGKey(0)
    pkey, xkey = jax.random.split(key)

    params = init_resnet_params(pkey, num_blocks=(1, 1, 1, 1), num_classes=5)

    # small input consistent with the stem (32x32 -> 16 -> 8 -> 4 -> 2 -> 1)
    x = jax.random.normal(xkey, (2, 3, 32, 32), jnp.float32)

    logits = resnet_forward(params, x)
    logits = jax.block_until_ready(logits)
    assert logits.shape == (2, 5), logits.shape
    assert bool(jnp.all(jnp.isfinite(logits)))
    print("KERNEL_OK")
</pallas_src>

<mosaic_0001>
module attributes {stable_mosaic.version = 11 : i64} {
  func.func @_matmul_stats_kernel(%arg0: i32, %arg1: i32, %arg2: i32, %arg3: memref<256x256xbf16, #tpu.memory_space<vmem>>, %arg4: memref<256x128xbf16, #tpu.memory_space<vmem>>, %arg5: memref<256x128xf32, #tpu.memory_space<vmem>>, %arg6: memref<8x128xf32, #tpu.memory_space<vmem>>, %arg7: memref<8x128xf32, #tpu.memory_space<vmem>>, %arg8: memref<256x128xf32, #tpu.memory_space<vmem>>) attributes {dimension_semantics = [#tpu.dimension_semantics<parallel>, #tpu.dimension_semantics<parallel>, #tpu.dimension_semantics<arbitrary>], iteration_bounds = array<i64: 2, 1, 1>, scalar_prefetch = 0 : i64, scratch_operands = 1 : i64, tpu.core_type = #tpu.core_type<tc>, window_params = [{transform_indices = @transform_0, window_bounds = array<i64: 256, 256>}, {transform_indices = @transform_1, window_bounds = array<i64: 256, 128>}, {transform_indices = @transform_2, window_bounds = array<i64: 256, 128>}, {transform_indices = @transform_3, window_bounds = array<i64: 8, 128>}, {transform_indices = @transform_4, window_bounds = array<i64: 8, 128>}]} {
    %c0_i32 = arith.constant 0 : i32
    %0 = arith.cmpi eq, %arg2, %c0_i32 : i32
    %1 = arith.extui %0 : i1 to i32
    %c0_i32_0 = arith.constant 0 : i32
    %2 = arith.cmpi ne, %1, %c0_i32_0 : i32
    scf.if %2 {
      %cst_10 = arith.constant 0.000000e+00 : f32
      %12 = vector.broadcast %cst_10 : f32 to vector<256x128xf32>
      %c0_11 = arith.constant 0 : index
      %c0_12 = arith.constant 0 : index
      %13 = vector.load %arg8[%c0_11, %c0_12] : memref<256x128xf32, #tpu.memory_space<vmem>>, vector<256x128xf32>
      tpu.vector_store %arg8[%c0_11, %c0_12], %12 {strides = array<i32>} : memref<256x128xf32, #tpu.memory_space<vmem>>, vector<256x128xf32>,
    } else {
    }
    %c0 = arith.constant 0 : index
    %c0_1 = arith.constant 0 : index
    %3 = vector.load %arg8[%c0, %c0_1] : memref<256x128xf32, #tpu.memory_space<vmem>>, vector<256x128xf32>
    %c0_2 = arith.constant 0 : index
    %c0_3 = arith.constant 0 : index
    %4 = vector.load %arg3[%c0_2, %c0_3] : memref<256x256xbf16, #tpu.memory_space<vmem>>, vector<256x256xbf16>
    %c0_4 = arith.constant 0 : index
    %c0_5 = arith.constant 0 : index
    %5 = vector.load %arg4[%c0_4, %c0_5] : memref<256x128xbf16, #tpu.memory_space<vmem>>, vector<256x128xbf16>
    %cst = arith.constant dense<0.000000e+00> : vector<256x128xf32>
    %6 = tpu.matmul %4, %5, %cst {dimension_numbers = #tpu.dot_dimension_numbers<[1], [0], [0], [1], [0, 0, 1, 1], [], []>} : vector<256x256xbf16>, vector<256x128xbf16>, vector<256x128xf32> -> vector<256x128xf32>
    %7 = arith.addf %3, %6 : vector<256x128xf32>
    %c0_6 = arith.constant 0 : index
    %c0_7 = arith.constant 0 : index
    %8 = vector.load %arg8[%c0_6, %c0_7] : memref<256x128xf32, #tpu.memory_space<vmem>>, vector<256x128xf32>
    tpu.vector_store %arg8[%c0_6, %c0_7], %7 {strides = array<i32>} : memref<256x128xf32, #tpu.memory_space<vmem>>, vector<256x128xf32>,
    %c0_i32_8 = arith.constant 0 : i32
    %9 = arith.cmpi eq, %arg2, %c0_i32_8 : i32
    %10 = arith.extui %9 : i1 to i32
    %c0_i32_9 = arith.constant 0 : i32
    %11 = arith.cmpi ne, %10, %c0_i32_9 : i32
    scf.if %11 {
      %c0_10 = arith.constant 0 : index
      %c0_11 = arith.constant 0 : index
      %12 = vector.load %arg8[%c0_10, %c0_11] : memref<256x128xf32, #tpu.memory_space<vmem>>, vector<256x128xf32>
      %c0_12 = arith.constant 0 : index
      %c0_13 = arith.constant 0 : index
      %13 = vector.load %arg5[%c0_12, %c0_13] : memref<256x128xf32, #tpu.memory_space<vmem>>, vector<256x128xf32>
      tpu.vector_store %arg5[%c0_12, %c0_13], %12 {strides = array<i32>} : memref<256x128xf32, #tpu.memory_space<vmem>>, vector<256x128xf32>,
      %cst_14 = arith.constant dense<0.000000e+00> : vector<128xf32>
      %14 = vector.multi_reduction <add>, %12, %cst_14 [0] : vector<256x128xf32> to vector<128xf32>
      %15 = vector.shape_cast %14 : vector<128xf32> to vector<1x128xf32>
      %16 = arith.mulf %12, %12 : vector<256x128xf32>
      %cst_15 = arith.constant dense<0.000000e+00> : vector<128xf32>
      %17 = vector.multi_reduction <add>, %16, %cst_15 [0] : vector<256x128xf32> to vector<128xf32>
      %18 = vector.shape_cast %17 : vector<128xf32> to vector<1x128xf32>
      %19 = vector.shape_cast %15 : vector<1x128xf32> to vector<1x128xf32>
      %20 = vector.broadcast %19 : vector<1x128xf32> to vector<8x128xf32>
      %c0_16 = arith.constant 0 : index
      %c0_17 = arith.constant 0 : index
      %21 = vector.load %arg6[%c0_16, %c0_17] : memref<8x128xf32, #tpu.memory_space<vmem>>, vector<8x128xf32>
      tpu.vector_store %arg6[%c0_16, %c0_17], %20 {strides = array<i32>} : memref<8x128xf32, #tpu.memory_space<vmem>>, vector<8x128xf32>,
      %22 = vector.shape_cast %18 : vector<1x128xf32> to vector<1x128xf32>
      %23 = vector.broadcast %22 : vector<1x128xf32> to vector<8x128xf32>
      %c0_18 = arith.constant 0 : index
      %c0_19 = arith.constant 0 : index
      %24 = vector.load %arg7[%c0_18, %c0_19] : memref<8x128xf32, #tpu.memory_space<vmem>>, vector<8x128xf32>
      tpu.vector_store %arg7[%c0_18, %c0_19], %23 {strides = array<i32>} : memref<8x128xf32, #tpu.memory_space<vmem>>, vector<8x128xf32>,
    } else {
    }
    return
  }
  func.func @transform_0(%arg0: i32, %arg1: i32, %arg2: i32) -> (i32, i32) {
    %c0_i32 = arith.constant 0 : i32
    return %arg0, %arg2 : i32, i32
  }
  func.func @transform_1(%arg0: i32, %arg1: i32, %arg2: i32) -> (i32, i32) {
    %c0_i32 = arith.constant 0 : i32
    return %arg2, %arg1 : i32, i32
  }
  func.func @transform_2(%arg0: i32, %arg1: i32, %arg2: i32) -> (i32, i32) {
    %c0_i32 = arith.constant 0 : i32
    return %arg0, %arg1 : i32, i32
  }
  func.func @transform_3(%arg0: i32, %arg1: i32, %arg2: i32) -> (i32, i32) {
    %c0_i32 = arith.constant 0 : i32
    return %arg0, %arg1 : i32, i32
  }
  func.func @transform_4(%arg0: i32, %arg1: i32, %arg2: i32) -> (i32, i32) {
    %c0_i32 = arith.constant 0 : i32
    return %arg0, %arg1 : i32, i32
  }
}

</mosaic_0001>

<llo_original>
// kernel: tpu_custom_call.1
$region0: #{tpu_custom_call.1}
  #allocation0 [shape = 'u32[]', space=smem, size = 0x4, offset = 0x4, fixed_abs, tag = 'smem constant byte address 0x4 - core index']
  #allocation1 [shape = 'u32[144,128]{1,0:T(1,128)}', space=vmem, size = 0x12000, scoped, tag = 'internal scratch']
  #allocation2 [shape = 'f32[256,128]{1,0:T(8,128)}', space=vmem, size = 0x20000, scoped, tag = 'scratch operand']
  %s0 = inlined_call_operand.hbm [shape: bf16[512,256], index: 0, kind: input, shape index: {}]
  %s1 = inlined_call_operand.hbm [shape: bf16[256,128], index: 1, kind: input, shape index: {}]
  %s2 = inlined_call_operand.hbm [shape: f32[512,128], index: 2, kind: output, shape index: {0}]
  %s3 = inlined_call_operand.hbm [shape: f32[16,128], index: 3, kind: output, shape index: {1}]
  %s4 = inlined_call_operand.hbm [shape: f32[16,128], index: 4, kind: output, shape index: {2}]
  %5 = xla_tuple %s2, %s3, %s4
  %s6 = sld [smem:[#allocation0]]
  $region73: #{tpu_custom_call.1} parent=0
    _
  %s8 = ssub.s32 1, %s6
  %s9 = scalar_select 0, %s8, %s6
  $region1: #{tpu_custom_call.1} parent=0
    #allocation3 [shape = 'u8[262144]{0}', space=vmem, size = 0x40000, scoped, tag = 'input window, operand 0']
    #allocation4 [shape = 's32[2]{0}', space=sflag, size = 0x8, scoped, tag = 'scoped memory for tpu_custom_call.1']
    #allocation5 [shape = 's32[2]{0}', space=sflag, size = 0x8, scoped, tag = 'scoped memory for tpu_custom_call.1']
    #allocation6 [shape = 'u8[65536]{0}', space=vmem, size = 0x10000, scoped, tag = 'input window, operand 1, single buffered']
    #allocation7 [shape = 's32[1]{0}', space=sflag, size = 0x4, scoped, tag = 'scoped memory for tpu_custom_call.1']
    #allocation8 [shape = 'u8[262144]{0}', space=vmem, size = 0x40000, scoped, tag = 'output window, operand 0']
    #allocation9 [shape = 'u8[8192]{0}', space=vmem, size = 0x2000, scoped, tag = 'output window, operand 1']
    #allocation10 [shape = 's32[2]{0}', space=sflag, size = 0x8, scoped, tag = 'scoped memory for tpu_custom_call.1']
    #allocation11 [shape = 'u8[8192]{0}', space=vmem, size = 0x2000, scoped, tag = 'output window, operand 2']
    %10 = vsyncpa [#allocation4], 0
    %s11 = scalar_lea.sflag [#allocation4], 1
    %12 = vsyncpa %s11, 0
    %13 = vsyncpa [#allocation7], 0
    %14 = vsyncpa [#allocation5], 0
    %s15 = scalar_lea.sflag [#allocation5], 1
    %16 = vsyncpa %s15, 0
    %17 = vsyncpa [#allocation10], 0
    %s18 = scalar_lea.sflag [#allocation10], 1
    %19 = vsyncpa %s18, 0
    loop: start=0, step=1, limit=4
    $region2: #{tpu_custom_call.1} parent=1 // loop_pre_header
      _
    $region3: #{tpu_custom_call.1} parent=1 // loop_header
      %s21 = sphi 0, %s25
      %p22 = scmp.ge.s32.totalorder %s21, 4
      %s28 = sphi 0, %s47
      %s29 = sphi 0, %s43
      %s30 = sphi 0, %s39
      %s31 = sphi 0, %s28
      %s32 = sphi 0, %s29
      %s33 = sphi 0, %s30
      %s34 = sphi 0, %s31
      %s35 = sphi 0, %s32
      %s36 = sphi 0, %s33
      %s52 = sphi 0, %s54
      %s55 = sphi 0, %s52
      %s56 = sphi 0, %s55
      %s72 = sphi 0, %s56
      %s80 = sphi 0, %s82
      %s83 = sphi 0, %s80
      %s84 = sphi 0, %s83
      %s100 = sphi 0, %s84
      %s108 = sphi 0, %s110
      %s111 = sphi 0, %s108
      %s112 = sphi 0, %s111
      %s128 = sphi 0, %s112
      %s136 = sphi 0, %s138
      %s139 = sphi 0, %s136
      %s140 = sphi 0, %s139
      %s156 = sphi 0, %s140
      %s164 = sphi 0, %s166
      %s167 = sphi 0, %s164
      %s168 = sphi 0, %s167
      %s184 = sphi 0, %s168
    $region4: #{tpu_custom_call.1} parent=1 // loop_header_branch
      %24 = sbr.rel (%p22) target = $region8
    $region5: #{tpu_custom_call.1} parent=1 // loop_body
      %s26 = ssub.s32 %s21, 1
      %s27 = ssub.s32 %s21, 2
      %s37 = sadd.s32 1, %s30
      %p38 = scmp.ge.s32.totalorder %s37, 1
      %s39 = scalar_select %p38, 0, %s37
      %s40 = sadd.s32 1, %s29
      %s41 = scalar_select %p38, %s40, %s29
      %p42 = scmp.ge.s32.totalorder %s41, 1
      %s43 = scalar_select %p42, 0, %s41
      %s44 = sadd.s32 1, %s28
      %s45 = scalar_select %p42, %s44, %s28
      %p46 = scmp.ge.s32.totalorder %s45, 2
      %s47 = scalar_select %p46, 0, %s45
      %s48 = ssub.s32 %s28, %s47
      %s49 = ssub.s32 %s30, %s39
      %s50 = sor.u32 %s48, %s49
      %p51 = scmp.eq.s32.totalorder %s50, 0
      %s53 = sadd.s32 %s52, 1
      %s54 = scalar_select %p51, %s52, %s53
      %p57 = pneg %p51
      %p58 = scmp.eq.s32.totalorder %s21, 1
      %p59 = por %p57, %p58
      %p60 = scmp.ne.s32.totalorder %s52, %s55
      %p61 = scmp.eq.s32.totalorder %s21, 0
      %p62 = por %p60, %p61
      %p63 = scmp.ne.s32.totalorder %s52, %s55
      %p64 = scmp.eq.s32.totalorder %s26, 1
      %p65 = por %p63, %p64
      %p66 = scmp.ne.s32.totalorder %s55, %s56
      %p67 = scmp.eq.s32.totalorder %s26, 0
      %p68 = por %p66, %p67
      %p69 = scmp.ne.s32.totalorder %s55, %s56
      %p70 = scmp.eq.s32.totalorder %s27, 1
      %p71 = por %p69, %p70
      %p73 = scmp.ne.s32.totalorder %s56, %s72
      %p74 = scmp.eq.s32.totalorder %s27, 0
      %p75 = por %p73, %p74
      %s76 = ssub.s32 %s30, %s39
      %s77 = ssub.s32 %s29, %s43
      %s78 = sor.u32 %s76, %s77
      %p79 = scmp.eq.s32.totalorder %s78, 0
      %s81 = sadd.s32 %s80, 1
      %s82 = scalar_select %p79, %s80, %s81
      %p85 = pneg %p79
      %p86 = scmp.eq.s32.totalorder %s21, 1
      %p87 = por %p85, %p86
      %p88 = scmp.ne.s32.totalorder %s80, %s83
      %p89 = scmp.eq.s32.totalorder %s21, 0
      %p90 = por %p88, %p89
      %p91 = scmp.ne.s32.totalorder %s80, %s83
      %p92 = scmp.eq.s32.totalorder %s26, 1
      %p93 = por %p91, %p92
      %p94 = scmp.ne.s32.totalorder %s83, %s84
      %p95 = scmp.eq.s32.totalorder %s26, 0
      %p96 = por %p94, %p95
      %p97 = scmp.ne.s32.totalorder %s83, %s84
      %p98 = scmp.eq.s32.totalorder %s27, 1
      %p99 = por %p97, %p98
      %p101 = scmp.ne.s32.totalorder %s84, %s100
      %p102 = scmp.eq.s32.totalorder %s27, 0
      %p103 = por %p101, %p102
      %s104 = ssub.s32 %s28, %s47
      %s105 = ssub.s32 %s29, %s43
      %s106 = sor.u32 %s104, %s105
      %p107 = scmp.eq.s32.totalorder %s106, 0
      %s109 = sadd.s32 %s108, 1
      %s110 = scalar_select %p107, %s108, %s109
      %p113 = pneg %p107
      %p114 = scmp.eq.s32.totalorder %s21, 1
      %p115 = por %p113, %p114
      %p116 = scmp.ne.s32.totalorder %s108, %s111
      %p117 = scmp.eq.s32.totalorder %s21, 0
      %p118 = por %p116, %p117
      %p119 = scmp.ne.s32.totalorder %s108, %s111
      %p120 = scmp.eq.s32.totalorder %s26, 1
      %p121 = por %p119, %p120
      %p122 = scmp.ne.s32.totalorder %s111, %s112
      %p123 = scmp.eq.s32.totalorder %s26, 0
      %p124 = por %p122, %p123
      %p125 = scmp.ne.s32.totalorder %s111, %s112
      %p126 = scmp.eq.s32.totalorder %s27, 1
      %p127 = por %p125, %p126
      %p129 = scmp.ne.s32.totalorder %s112, %s128
      %p130 = scmp.eq.s32.totalorder %s27, 0
      %p131 = por %p129, %p130
      %s132 = ssub.s32 %s28, %s47
      %s133 = ssub.s32 %s29, %s43
      %s134 = sor.u32 %s132, %s133
      %p135 = scmp.eq.s32.totalorder %s134, 0
      %s137 = sadd.s32 %s136, 1
      %s138 = scalar_select %p135, %s136, %s137
      %p141 = pneg %p135
      %p142 = scmp.eq.s32.totalorder %s21, 1
      %p143 = por %p141, %p142
      %p144 = scmp.ne.s32.totalorder %s136, %s139
      %p145 = scmp.eq.s32.totalorder %s21, 0
      %p146 = por %p144, %p145
      %p147 = scmp.ne.s32.totalorder %s136, %s139
      %p148 = scmp.eq.s32.totalorder %s26, 1
      %p149 = por %p147, %p148
      %p150 = scmp.ne.s32.totalorder %s139, %s140
      %p151 = scmp.eq.s32.totalorder %s26, 0
      %p152 = por %p150, %p151
      %p153 = scmp.ne.s32.totalorder %s139, %s140
      %p154 = scmp.eq.s32.totalorder %s27, 1
      %p155 = por %p153, %p154
      %p157 = scmp.ne.s32.totalorder %s140, %s156
      %p158 = scmp.eq.s32.totalorder %s27, 0
      %p159 = por %p157, %p158
      %s160 = ssub.s32 %s28, %s47
      %s161 = ssub.s32 %s29, %s43
      %s162 = sor.u32 %s160, %s161
      %p163 = scmp.eq.s32.totalorder %s162, 0
      %s165 = sadd.s32 %s164, 1
      %s166 = scalar_select %p163, %s164, %s165
      %p169 = pneg %p163
      %p170 = scmp.eq.s32.totalorder %s21, 1
      %p171 = por %p169, %p170
      %p172 = scmp.ne.s32.totalorder %s164, %s167
      %p173 = scmp.eq.s32.totalorder %s21, 0
      %p174 = por %p172, %p173
      %p175 = scmp.ne.s32.totalorder %s164, %s167
      %p176 = scmp.eq.s32.totalorder %s26, 1
      %p177 = por %p175, %p176
      %p178 = scmp.ne.s32.totalorder %s167, %s168
      %p179 = scmp.eq.s32.totalorder %s26, 0
      %p180 = por %p178, %p179
      %p181 = scmp.ne.s32.totalorder %s167, %s168
      %p182 = scmp.eq.s32.totalorder %s27, 1
      %p183 = por %p181, %p182
      %p185 = scmp.ne.s32.totalorder %s168, %s184
      %p186 = scmp.eq.s32.totalorder %s27, 0
      %p187 = por %p185, %p186
      %p188 = scmp.le.s32.totalorder 1, %s21
      %p189 = scmp.lt.s32.totalorder %s21, 3
      %p190 = pnand %p188, %p189
      %p191 = pneg %p190
      // Predicated region
      $region9: #{tpu_custom_call.1} parent=5 // pred_check
        _
      $region10: #{tpu_custom_call.1} parent=5 // pred_check_branch
        %193 = sbr.rel (%p190) target = $region12
      $region11: #{tpu_custom_call.1} parent=5 // pred_region
        %s194 = ssub.s32 %s21, 1
        // Predicated region
        $region13: #{tpu_custom_call.1} parent=11 // pred_check
          %p195 = pneg %p96
        $region14: #{tpu_custom_call.1} parent=11 // pred_check_branch
          %197 = sbr.rel (%p195) target = $region16
        $region15: #{tpu_custom_call.1} parent=11 // pred_region
          %s198 = smul.u32 32, %s33
          %s200 = ssub.s32 2048, 2048
          %201 = vsyncadd [#allocation7], %s200
          %s202 = sadd.s32 %s32, %s198
          %s203 = smul.addr %s202, 64
          %s204 = scalar_lea.hbm %s1, %s203
          %s205 = sshll.u32 [#allocation6], 4
          %s206 = int_to_ptr.vmem [resolvable:$true] %s205
          %211 = dma.hbm_to_vmem [thread:$0]  %s204, 2048, %s206, [#allocation7], 64, 64, 4
        $region16: #{tpu_custom_call.1} parent=11 // pred_fallthru
          _
      $region12: #{tpu_custom_call.1} parent=5 // pred_fallthru
        _
      %p212 = scmp.lt.s32.totalorder %s21, 2
      // Predicated region
      $region17: #{tpu_custom_call.1} parent=5 // pred_check
        %p213 = pneg %p212
      $region18: #{tpu_custom_call.1} parent=5 // pred_check_branch
        %215 = sbr.rel (%p213) target = $region20
      $region19: #{tpu_custom_call.1} parent=5 // pred_region
        // Predicated region
        $region21: #{tpu_custom_call.1} parent=19 // pred_check
          %p216 = pneg %p62
        $region22: #{tpu_custom_call.1} parent=19 // pred_check_branch
          %218 = sbr.rel (%p216) target = $region24
        $region23: #{tpu_custom_call.1} parent=19 // pred_region
          %s219 = sand.u32 %s52, 1
          %s220 = scalar_lea.sflag [#allocation4], %s219
          %s221 = sand.u32 %s52, 1
          %s222 = smul.addr %s221, 256
          %s223 = scalar_lea.vmem [#allocation3], %s222
          %s224 = smul.u32 32, %s28
          %s225 = smul.u32 2, %s30
          %s227 = ssub.s32 4096, 4096
          %228 = vsyncadd %s220, %s227
          %s229 = smul.addr %s224, 2
          %s230 = sadd.s32 %s225, %s229
          %s231 = smul.addr %s230, 64
          %s232 = scalar_lea.hbm %s0, %s231
          %s233 = sshll.u32 %s223, 4
          %s234 = int_to_ptr.vmem [resolvable:$true] %s233
          %239 = dma.hbm_to_vmem [thread:$0]  %s232, 4096, %s234, %s220, 128, 128, 8
        $region24: #{tpu_custom_call.1} parent=19 // pred_fallthru
          _
      $region20: #{tpu_custom_call.1} parent=5 // pred_fallthru
        _
      %p240 = scmp.le.s32.totalorder 1, %s21
      %p241 = scmp.lt.s32.totalorder %s21, 3
      %p242 = pnand %p240, %p241
      %p243 = pneg %p242
      // Predicated region
      $region25: #{tpu_custom_call.1} parent=5 // pred_check
        _
      $region26: #{tpu_custom_call.1} parent=5 // pred_check_branch
        %245 = sbr.rel (%p242) target = $region28
      $region27: #{tpu_custom_call.1} parent=5 // pred_region
        %s246 = ssub.s32 %s21, 1
        %s247 = sand.u32 %s55, 1
        %s248 = scalar_lea.sflag [#allocation4], %s247
        %s249 = sand.u32 %s55, 1
        %s250 = smul.addr %s249, 256
        %s251 = scalar_lea.vmem [#allocation3], %s250
        // Predicated region
        $region29: #{tpu_custom_call.1} parent=27 // pred_check
          %p252 = pneg %p68
        $region30: #{tpu_custom_call.1} parent=27 // pred_check_branch
          %254 = sbr.rel (%p252) target = $region32
        $region31: #{tpu_custom_call.1} parent=27 // pred_region
          %255 = dma.done %s248, 4096
        $region32: #{tpu_custom_call.1} parent=27 // pred_fallthru
          _
        // Predicated region
        $region33: #{tpu_custom_call.1} parent=27 // pred_check
          %p256 = pneg %p96
        $region34: #{tpu_custom_call.1} parent=27 // pred_check_branch
          %258 = sbr.rel (%p256) target = $region36
        $region35: #{tpu_custom_call.1} parent=27 // pred_region
          %259 = dma.done [#allocation7], 2048
        $region36: #{tpu_custom_call.1} parent=27 // pred_fallthru
          _
        %s260 = sand.u32 %s55, 1
        %s261 = scalar_lea.sflag [#allocation4], %s260
        %s262 = sand.u32 %s55, 1
        %s263 = smul.addr %s262, 256
        %s264 = scalar_lea.vmem [#allocation3], %s263
        %p265 = pneg %p68
        %p266 = pneg %p65
        %p267 = pneg %p96
        %p268 = pneg %p93
        %p269 = pneg %p124
        %p270 = pneg %p121
        %s271 = sand.u32 %s111, 1
        %s272 = scalar_lea.sflag [#allocation5], %s271
        %s273 = sand.u32 %s111, 1
        %s274 = smul.addr %s273, 256
        %s275 = scalar_lea.vmem [#allocation8], %s274
        %p276 = pneg %p152
        %p277 = pneg %p149
        %s278 = sand.u32 %s26, 1
        %s279 = scalar_lea.sflag [#allocation10], %s278
        %s280 = sand.u32 %s139, 1
        %s281 = smul.addr %s280, 8
        %s282 = scalar_lea.vmem [#allocation9], %s281
        %p283 = pneg %p180
        %p284 = pneg %p177
        %s285 = sand.u32 %s26, 1
        %s286 = scalar_lea.sflag [#allocation10], %s285
        %s287 = sand.u32 %s167, 1
        %s288 = smul.addr %s287, 8
        %s289 = scalar_lea.vmem [#allocation11], %s288
        %s290 = smul.u32 32, %s31
        %s291 = smul.u32 2, %s33
        %s292 = smul.u32 32, %s33
        %s293 = smul.u32 32, %s31
        %p295 = scmp.eq.s32.totalorder %s33, 0
        // Predicated region
        $region37: #{tpu_custom_call.1} parent=27 // pred_check
          %p296 = pneg %p295
        $region38: #{tpu_custom_call.1} parent=27 // pred_check_branch
          %298 = sbr.rel (%p296) target = $region40
        $region39: #{tpu_custom_call.1} parent=27 // pred_region
          %299 = vst [vmem:[#allocation2] sm:$0xff] 0.0
          %300 = vst [vmem:[#allocation2 + $0x8] sm:$0xff] 0.0
          %301 = vst [vmem:[#allocation2 + $0x10] sm:$0xff] 0.0
          %302 = vst [vmem:[#allocation2 + $0x18] sm:$0xff] 0.0
          %303 = vst [vmem:[#allocation2 + $0x20] sm:$0xff] 0.0
          %304 = vst [vmem:[#allocation2 + $0x28] sm:$0xff] 0.0
          %305 = vst [vmem:[#allocation2 + $0x30] sm:$0xff] 0.0
          %306 = vst [vmem:[#allocation2 + $0x38] sm:$0xff] 0.0
          %307 = vst [vmem:[#allocation2 + $0x40] sm:$0xff] 0.0
          %308 = vst [vmem:[#allocation2 + $0x48] sm:$0xff] 0.0
          %309 = vst [vmem:[#allocation2 + $0x50] sm:$0xff] 0.0
          %310 = vst [vmem:[#allocation2 + $0x58] sm:$0xff] 0.0
          %311 = vst [vmem:[#allocation2 + $0x60] sm:$0xff] 0.0
          %312 = vst [vmem:[#allocation2 + $0x68] sm:$0xff] 0.0
          %313 = vst [vmem:[#allocation2 + $0x70] sm:$0xff] 0.0
          %314 = vst [vmem:[#allocation2 + $0x78] sm:$0xff] 0.0
          %315 = vst [vmem:[#allocation2 + $0x80] sm:$0xff] 0.0
          %316 = vst [vmem:[#allocation2 + $0x88] sm:$0xff] 0.0
          %317 = vst [vmem:[#allocation2 + $0x90] sm:$0xff] 0.0
          %318 = vst [vmem:[#allocation2 + $0x98] sm:$0xff] 0.0
          %319 = vst [vmem:[#allocation2 + $0xa0] sm:$0xff] 0.0
          %320 = vst [vmem:[#allocation2 + $0xa8] sm:$0xff] 0.0
          %321 = vst [vmem:[#allocation2 + $0xb0] sm:$0xff] 0.0
          %322 = vst [vmem:[#allocation2 + $0xb8] sm:$0xff] 0.0
          %323 = vst [vmem:[#allocation2 + $0xc0] sm:$0xff] 0.0
          %324 = vst [vmem:[#allocation2 + $0xc8] sm:$0xff] 0.0
          %325 = vst [vmem:[#allocation2 + $0xd0] sm:$0xff] 0.0
          %326 = vst [vmem:[#allocation2 + $0xd8] sm:$0xff] 0.0
          %327 = vst [vmem:[#allocation2 + $0xe0] sm:$0xff] 0.0
          %328 = vst [vmem:[#allocation2 + $0xe8] sm:$0xff] 0.0
          %329 = vst [vmem:[#allocation2 + $0xf0] sm:$0xff] 0.0
          %330 = vst [vmem:[#allocation2 + $0xf8] sm:$0xff] 0.0
        $region40: #{tpu_custom_call.1} parent=27 // pred_fallthru
          _
        %v331 = vld [vmem:[#allocation2] sm:$0xff]
        %v332 = vld [vmem:[#allocation2 + $0x8] sm:$0xff]
        %v333 = vld [vmem:[#allocation2 + $0x10] sm:$0xff]
        %v334 = vld [vmem:[#allocation2 + $0x18] sm:$0xff]
        %v335 = vld [vmem:[#allocation2 + $0x20] sm:$0xff]
        %v336 = vld [vmem:[#allocation2 + $0x28] sm:$0xff]
        %v337 = vld [vmem:[#allocation2 + $0x30] sm:$0xff]
        %v338 = vld [vmem:[#allocation2 + $0x38] sm:$0xff]
        %v339 = vld [vmem:[#allocation2 + $0x40] sm:$0xff]
        %v340 = vld [vmem:[#allocation2 + $0x48] sm:$0xff]
        %v341 = vld [vmem:[#allocation2 + $0x50] sm:$0xff]
        %v342 = vld [vmem:[#allocation2 + $0x58] sm:$0xff]
        %v343 = vld [vmem:[#allocation2 + $0x60] sm:$0xff]
        %v344 = vld [vmem:[#allocation2 + $0x68] sm:$0xff]
        %v345 = vld [vmem:[#allocation2 + $0x70] sm:$0xff]
        %v346 = vld [vmem:[#allocation2 + $0x78] sm:$0xff]
        %v347 = vld [vmem:[#allocation2 + $0x80] sm:$0xff]
        %v348 = vld [vmem:[#allocation2 + $0x88] sm:$0xff]
        %v349 = vld [vmem:[#allocation2 + $0x90] sm:$0xff]
        %v350 = vld [vmem:[#allocation2 + $0x98] sm:$0xff]
        %v351 = vld [vmem:[#allocation2 + $0xa0] sm:$0xff]
        %v352 = vld [vmem:[#allocation2 + $0xa8] sm:$0xff]
        %v353 = vld [vmem:[#allocation2 + $0xb0] sm:$0xff]
        %v354 = vld [vmem:[#allocation2 + $0xb8] sm:$0xff]
        %v355 = vld [vmem:[#allocation2 + $0xc0] sm:$0xff]
        %v356 = vld [vmem:[#allocation2 + $0xc8] sm:$0xff]
        %v357 = vld [vmem:[#allocation2 + $0xd0] sm:$0xff]
        %v358 = vld [vmem:[#allocation2 + $0xd8] sm:$0xff]
        %v359 = vld [vmem:[#allocation2 + $0xe0] sm:$0xff]
        %v360 = vld [vmem:[#allocation2 + $0xe8] sm:$0xff]
        %v361 = vld [vmem:[#allocation2 + $0xf0] sm:$0xff]
        %v362 = vld [vmem:[#allocation2 + $0xf8] sm:$0xff]
        %v363 = vld [vmem:[%s251] sm:$0xff]
        %v364 = vld [vmem:[%s251 + $0x8] sm:$0xff]
        %v365 = vld [vmem:[%s251 + $0x10] sm:$0xff]
        %v366 = vld [vmem:[%s251 + $0x18] sm:$0xff]
        %v367 = vld [vmem:[%s251 + $0x20] sm:$0xff]
        %v368 = vld [vmem:[%s251 + $0x28] sm:$0xff]
        %v369 = vld [vmem:[%s251 + $0x30] sm:$0xff]
        %v370 = vld [vmem:[%s251 + $0x38] sm:$0xff]
        %v371 = vld [vmem:[%s251 + $0x40] sm:$0xff]
        %v372 = vld [vmem:[%s251 + $0x48] sm:$0xff]
        %v373 = vld [vmem:[%s251 + $0x50] sm:$0xff]
        %v374 = vld [vmem:[%s251 + $0x58] sm:$0xff]
        %v375 = vld [vmem:[%s251 + $0x60] sm:$0xff]
        %v376 = vld [vmem:[%s251 + $0x68] sm:$0xff]
        %v377 = vld [vmem:[%s251 + $0x70] sm:$0xff]
        %v378 = vld [vmem:[%s251 + $0x78] sm:$0xff]
        %v379 = vld [vmem:[%s251 + $0x80] sm:$0xff]
        %v380 = vld [vmem:[%s251 + $0x88] sm:$0xff]
        %v381 = vld [vmem:[%s251 + $0x90] sm:$0xff]
        %v382 = vld [vmem:[%s251 + $0x98] sm:$0xff]
        %v383 = vld [vmem:[%s251 + $0xa0] sm:$0xff]
        %v384 = vld [vmem:[%s251 + $0xa8] sm:$0xff]
        %v385 = vld [vmem:[%s251 + $0xb0] sm:$0xff]
        %v386 = vld [vmem:[%s251 + $0xb8] sm:$0xff]
        %v387 = vld [vmem:[%s251 + $0xc0] sm:$0xff]
        %v388 = vld [vmem:[%s251 + $0xc8] sm:$0xff]
        %v389 = vld [vmem:[%s251 + $0xd0] sm:$0xff]
        %v390 = vld [vmem:[%s251 + $0xd8] sm:$0xff]
        %v391 = vld [vmem:[%s251 + $0xe0] sm:$0xff]
        %v392 = vld [vmem:[%s251 + $0xe8] sm:$0xff]
        %v393 = vld [vmem:[%s251 + $0xf0] sm:$0xff]
        %v394 = vld [vmem:[%s251 + $0xf8] sm:$0xff]
        %v395 = vld [vmem:[#allocation6] sm:$0xf]
        %v396 = vld [vmem:[#allocation6 + $0x4] sm:$0xf]
        %v397 = vld [vmem:[#allocation6 + $0x8] sm:$0xf]
        %v398 = vld [vmem:[#allocation6 + $0xc] sm:$0xf]
        %v399 = vld [vmem:[#allocation6 + $0x10] sm:$0xf]
        %v400 = vld [vmem:[#allocation6 + $0x14] sm:$0xf]
        %v401 = vld [vmem:[#allocation6 + $0x18] sm:$0xf]
        %v402 = vld [vmem:[#allocation6 + $0x1c] sm:$0xf]
        %v403 = vld [vmem:[#allocation6 + $0x20] sm:$0xf]
        %v404 = vld [vmem:[#allocation6 + $0x24] sm:$0xf]
        %v405 = vld [vmem:[#allocation6 + $0x28] sm:$0xf]
        %v406 = vld [vmem:[#allocation6 + $0x2c] sm:$0xf]
        %v407 = vld [vmem:[#allocation6 + $0x30] sm:$0xf]
        %v408 = vld [vmem:[#allocation6 + $0x34] sm:$0xf]
        %v409 = vld [vmem:[#allocation6 + $0x38] sm:$0xf]
        %v410 = vld [vmem:[#allocation6 + $0x3c] sm:$0xf]
        %v411 = vld [vmem:[#allocation6 + $0x40] sm:$0xf]
        %v412 = vld [vmem:[#allocation6 + $0x44] sm:$0xf]
        %v413 = vld [vmem:[#allocation6 + $0x48] sm:$0xf]
        %v414 = vld [vmem:[#allocation6 + $0x4c] sm:$0xf]
        %v415 = vld [vmem:[#allocation6 + $0x50] sm:$0xf]
        %v416 = vld [vmem:[#allocation6 + $0x54] sm:$0xf]
        %v417 = vld [vmem:[#allocation6 + $0x58] sm:$0xf]
        %v418 = vld [vmem:[#allocation6 + $0x5c] sm:$0xf]
        %v419 = vld [vmem:[#allocation6 + $0x60] sm:$0xf]
        %v420 = vld [vmem:[#allocation6 + $0x64] sm:$0xf]
        %v421 = vld [vmem:[#allocation6 + $0x68] sm:$0xf]
        %v422 = vld [vmem:[#allocation6 + $0x6c] sm:$0xf]
        %v423 = vld [vmem:[#allocation6 + $0x70] sm:$0xf]
        %v424 = vld [vmem:[#allocation6 + $0x74] sm:$0xf]
        %v425 = vld [vmem:[#allocation6 + $0x78] sm:$0xf]
        %v426 = vld [vmem:[#allocation6 + $0x7c] sm:$0xf]
        %v459 = vunpack.c.l.b16 %v363
        %v460 = vunpack.c.h.b16 %v363
        %v461 = vunpack.c.l.b16 %v364
        %v462 = vunpack.c.h.b16 %v364
        %v463 = vunpack.c.l.b16 %v365
        %v464 = vunpack.c.h.b16 %v365
        %v465 = vunpack.c.l.b16 %v366
        %v466 = vunpack.c.h.b16 %v366
        %v467 = vunpack.c.l.b16 %v367
        %v468 = vunpack.c.h.b16 %v367
        %v469 = vunpack.c.l.b16 %v368
        %v470 = vunpack.c.h.b16 %v368
        %v471 = vunpack.c.l.b16 %v369
        %v472 = vunpack.c.h.b16 %v369
        %v473 = vunpack.c.l.b16 %v370
        %v474 = vunpack.c.h.b16 %v370
        %v475 = vunpack.c.l.b16 %v371
        %v476 = vunpack.c.h.b16 %v371
        %v477 = vunpack.c.l.b16 %v372
        %v478 = vunpack.c.h.b16 %v372
        %v479 = vunpack.c.l.b16 %v373
        %v480 = vunpack.c.h.b16 %v373
        %v481 = vunpack.c.l.b16 %v374
        %v482 = vunpack.c.h.b16 %v374
        %v483 = vunpack.c.l.b16 %v375
        %v484 = vunpack.c.h.b16 %v375
        %v485 = vunpack.c.l.b16 %v376
        %v486 = vunpack.c.h.b16 %v376
        %v487 = vunpack.c.l.b16 %v377
        %v488 = vunpack.c.h.b16 %v377
        %v489 = vunpack.c.l.b16 %v378
        %v490 = vunpack.c.h.b16 %v378
        %v491 = vunpack.c.l.b16 %v379
        %v492 = vunpack.c.h.b16 %v379
        %v493 = vunpack.c.l.b16 %v380
        %v494 = vunpack.c.h.b16 %v380
        %v495 = vunpack.c.l.b16 %v381
        %v496 = vunpack.c.h.b16 %v381
        %v497 = vunpack.c.l.b16 %v382
        %v498 = vunpack.c.h.b16 %v382
        %v499 = vunpack.c.l.b16 %v383
        %v500 = vunpack.c.h.b16 %v383
        %v501 = vunpack.c.l.b16 %v384
        %v502 = vunpack.c.h.b16 %v384
        %v503 = vunpack.c.l.b16 %v385
        %v504 = vunpack.c.h.b16 %v385
        %v505 = vunpack.c.l.b16 %v386
        %v506 = vunpack.c.h.b16 %v386
        %v507 = vunpack.c.l.b16 %v387
        %v508 = vunpack.c.h.b16 %v387
        %v509 = vunpack.c.l.b16 %v388
        %v510 = vunpack.c.h.b16 %v388
        %v511 = vunpack.c.l.b16 %v389
        %v512 = vunpack.c.h.b16 %v389
        %v513 = vunpack.c.l.b16 %v390
        %v514 = vunpack.c.h.b16 %v390
        %v515 = vunpack.c.l.b16 %v391
        %v516 = vunpack.c.h.b16 %v391
        %v517 = vunpack.c.l.b16 %v392
        %v518 = vunpack.c.h.b16 %v392
        %v519 = vunpack.c.l.b16 %v393
        %v520 = vunpack.c.h.b16 %v393
        %v521 = vunpack.c.l.b16 %v394
        %v522 = vunpack.c.h.b16 %v394
        %v523 = vpack.c.b16 %v461, %v459
        %v524 = vpack.c.b16 %v462, %v460
        %v525 = vpack.c.b16 %v465, %v463
        %v526 = vpack.c.b16 %v466, %v464
        %v527 = vpack.c.b16 %v469, %v467
        %v528 = vpack.c.b16 %v470, %v468
        %v529 = vpack.c.b16 %v473, %v471
        %v530 = vpack.c.b16 %v474, %v472
        %v531 = vpack.c.b16 %v477, %v475
        %v532 = vpack.c.b16 %v478, %v476
        %v533 = vpack.c.b16 %v481, %v479
        %v534 = vpack.c.b16 %v482, %v480
        %v535 = vpack.c.b16 %v485, %v483
        %v536 = vpack.c.b16 %v486, %v484
        %v537 = vpack.c.b16 %v489, %v487
        %v538 = vpack.c.b16 %v490, %v488
        %v539 = vpack.c.b16 %v493, %v491
        %v540 = vpack.c.b16 %v494, %v492
        %v541 = vpack.c.b16 %v497, %v495
        %v542 = vpack.c.b16 %v498, %v496
        %v543 = vpack.c.b16 %v501, %v499
        %v544 = vpack.c.b16 %v502, %v500
        %v545 = vpack.c.b16 %v505, %v503
        %v546 = vpack.c.b16 %v506, %v504
        %v547 = vpack.c.b16 %v509, %v507
        %v548 = vpack.c.b16 %v510, %v508
        %v549 = vpack.c.b16 %v513, %v511
        %v550 = vpack.c.b16 %v514, %v512
        %v551 = vpack.c.b16 %v517, %v515
        %v552 = vpack.c.b16 %v518, %v516
        %v553 = vpack.c.b16 %v521, %v519
        %v554 = vpack.c.b16 %v522, %v520
        %v619 = vunpack.c.l.b16 %v395
        %v620 = vunpack.c.l.b16 %v396
        %v621 = vunpack.c.l.b16 %v397
        %v622 = vunpack.c.l.b16 %v398
        %v623 = vunpack.c.l.b16 %v399
        %v624 = vunpack.c.l.b16 %v400
        %v625 = vunpack.c.l.b16 %v401
        %v626 = vunpack.c.l.b16 %v402
        %v627 = vunpack.c.l.b16 %v403
        %v628 = vunpack.c.l.b16 %v404
        %v629 = vunpack.c.l.b16 %v405
        %v630 = vunpack.c.l.b16 %v406
        %v631 = vunpack.c.l.b16 %v407
        %v632 = vunpack.c.l.b16 %v408
        %v633 = vunpack.c.l.b16 %v409
        %v634 = vunpack.c.l.b16 %v410
        %v635 = vunpack.c.l.b16 %v411
        %v636 = vunpack.c.l.b16 %v412
        %v637 = vunpack.c.l.b16 %v413
        %v638 = vunpack.c.l.b16 %v414
        %v639 = vunpack.c.l.b16 %v415
        %v640 = vunpack.c.l.b16 %v416
        %v641 = vunpack.c.l.b16 %v417
        %v642 = vunpack.c.l.b16 %v418
        %v643 = vunpack.c.l.b16 %v419
        %v644 = vunpack.c.l.b16 %v420
        %v645 = vunpack.c.l.b16 %v421
        %v646 = vunpack.c.l.b16 %v422
        %v647 = vunpack.c.l.b16 %v423
        %v648 = vunpack.c.l.b16 %v424
        %v649 = vunpack.c.l.b16 %v425
        %v650 = vunpack.c.l.b16 %v426
        %v651 = vpack.c.b16 %v620, %v619
        %v652 = vpack.c.b16 %v622, %v621
        %v653 = vpack.c.b16 %v624, %v623
        %v654 = vpack.c.b16 %v626, %v625
        %v655 = vpack.c.b16 %v628, %v627
        %v656 = vpack.c.b16 %v630, %v629
        %v657 = vpack.c.b16 %v632, %v631
        %v658 = vpack.c.b16 %v634, %v633
        %v659 = vpack.c.b16 %v636, %v635
        %v660 = vpack.c.b16 %v638, %v637
        %v661 = vpack.c.b16 %v640, %v639
        %v662 = vpack.c.b16 %v642, %v641
        %v663 = vpack.c.b16 %v644, %v643
        %v664 = vpack.c.b16 %v646, %v645
        %v665 = vpack.c.b16 %v648, %v647
        %v666 = vpack.c.b16 %v650, %v649
        %683 = vmatprep.subr.bf16.mxu0 0
        %684 = vmatpush1.bf16.msra.mxu0 %v651
        %685 = vmatprep.subr.bf16.mxu0 0
        %686 = vmatpush1.bf16.msra.mxu0 %v652
        %687 = vmatprep.subr.bf16.mxu0 0
        %688 = vmatpush1.bf16.msra.mxu0 %v653
        %689 = vmatprep.subr.bf16.mxu0 0
        %690 = vmatpush1.bf16.msra.mxu0 %v654
        %691 = vmatprep.subr.bf16.mxu0 0
        %692 = vmatpush1.bf16.msra.mxu0 %v655
        %693 = vmatprep.subr.bf16.mxu0 0
        %694 = vmatpush1.bf16.msra.mxu0 %v656
        %695 = vmatprep.subr.bf16.mxu0 0
        %696 = vmatpush1.bf16.msra.mxu0 %v657
        %697 = vmatprep.subr.bf16.mxu0 0
        %698 = vmatpush1.bf16.msra.mxu0 %v658
        %699 = vmatprep.subr.bf16.mxu0 0
        %700 = vmatpush1.bf16.msra.mxu0 %v659
        %701 = vmatprep.subr.bf16.mxu0 0
        %702 = vmatpush1.bf16.msra.mxu0 %v660
        %703 = vmatprep.subr.bf16.mxu0 0
        %704 = vmatpush1.bf16.msra.mxu0 %v661
        %705 = vmatprep.subr.bf16.mxu0 0
        %706 = vmatpush1.bf16.msra.mxu0 %v662
        %707 = vmatprep.subr.bf16.mxu0 0
        %708 = vmatpush1.bf16.msra.mxu0 %v663
        %709 = vmatprep.subr.bf16.mxu0 0
        %710 = vmatpush1.bf16.msra.mxu0 %v664
        %711 = vmatprep.subr.bf16.mxu0 0
        %712 = vmatpush1.bf16.msra.mxu0 %v665
        %713 = vmatprep.subr.bf16.mxu0 0
        %714 = vmatpush1.bf16.msra.mxu0 %v666
        %715 = vmatprep.mubr.bf16.mxu0 %v524
        %716 = vmatmul.mubr.bf16.gmra.mrb[0].mxu0 %v523
        %v717 = vpop.f32.mrb[0].mxu0
        %v718 = vadd.f32 0.0, %v717
        %v719 = vpop.f32.mrb[0].mxu0
        %v720 = vpop.f32.mrb[0].mxu0
        %v721 = vadd.f32 0.0, %v720
        %v722 = vpop.f32.mrb[0].mxu0
        %723 = vmatprep.mubr.bf16.mxu0 %v526
        %724 = vmatmul.mubr.bf16.gmra.mrb[0].mxu0 %v525
        %v725 = vpop.f32.mrb[0].mxu0
        %v726 = vadd.f32 0.0, %v725
        %v727 = vpop.f32.mrb[0].mxu0
        %v728 = vpop.f32.mrb[0].mxu0
        %v729 = vadd.f32 0.0, %v728
        %v730 = vpop.f32.mrb[0].mxu0
        %731 = vmatprep.mubr.bf16.mxu0 %v528
        %732 = vmatmul.mubr.bf16.gmra.mrb[0].mxu0 %v527
        %v733 = vpop.f32.mrb[0].mxu0
        %v734 = vadd.f32 0.0, %v733
        %v735 = vpop.f32.mrb[0].mxu0
        %v736 = vpop.f32.mrb[0].mxu0
        %v737 = vadd.f32 0.0, %v736
        %v738 = vpop.f32.mrb[0].mxu0
        %739 = vmatprep.mubr.bf16.mxu0 %v530
        %740 = vmatmul.mubr.bf16.gmra.mrb[0].mxu0 %v529
        %v741 = vpop.f32.mrb[0].mxu0
        %v742 = vadd.f32 0.0, %v741
        %v743 = vpop.f32.mrb[0].mxu0
        %v744 = vpop.f32.mrb[0].mxu0
        %v745 = vadd.f32 0.0, %v744
        %v746 = vpop.f32.mrb[0].mxu0
        %747 = vmatprep.mubr.bf16.mxu0 %v532
        %748 = vmatmul.mubr.bf16.gmra.mrb[0].mxu0 %v531
        %v749 = vpop.f32.mrb[0].mxu0
        %v750 = vadd.f32 0.0, %v749
        %v751 = vpop.f32.mrb[0].mxu0
        %v752 = vpop.f32.mrb[0].mxu0
        %v753 = vadd.f32 0.0, %v752
        %v754 = vpop.f32.mrb[0].mxu0
        %755 = vmatprep.mubr.bf16.mxu0 %v534
        %756 = vmatmul.mubr.bf16.gmra.mrb[0].mxu0 %v533
        %v757 = vpop.f32.mrb[0].mxu0
        %v758 = vadd.f32 0.0, %v757
        %v759 = vpop.f32.mrb[0].mxu0
        %v760 = vpop.f32.mrb[0].mxu0
        %v761 = vadd.f32 0.0, %v760
        %v762 = vpop.f32.mrb[0].mxu0
        %763 = vmatprep.mubr.bf16.mxu0 %v536
        %764 = vmatmul.mubr.bf16.gmra.mrb[0].mxu0 %v535
        %v765 = vpop.f32.mrb[0].mxu0
        %v766 = vadd.f32 0.0, %v765
        %v767 = vpop.f32.mrb[0].mxu0
        %v768 = vpop.f32.mrb[0].mxu0
        %v769 = vadd.f32 0.0, %v768
        %v770 = vpop.f32.mrb[0].mxu0
        %771 = vmatprep.mubr.bf16.mxu0 %v538
        %772 = vmatmul.mubr.bf16.gmra.mrb[0].mxu0 %v537
        %v773 = vpop.f32.mrb[0].mxu0
        %v774 = vadd.f32 0.0, %v773
        %v775 = vpop.f32.mrb[0].mxu0
        %v776 = vpop.f32.mrb[0].mxu0
        %v777 = vadd.f32 0.0, %v776
        %v778 = vpop.f32.mrb[0].mxu0
        %779 = vmatprep.mubr.bf16.mxu0 %v540
        %780 = vmatmul.mubr.bf16.gmra.mrb[0].mxu0 %v539
        %v781 = vpop.f32.mrb[0].mxu0
        %v782 = vadd.f32 0.0, %v781
        %v783 = vpop.f32.mrb[0].mxu0
        %v784 = vpop.f32.mrb[0].mxu0
        %v785 = vadd.f32 0.0, %v784
        %v786 = vpop.f32.mrb[0].mxu0
        %787 = vmatprep.mubr.bf16.mxu0 %v542
        %788 = vmatmul.mubr.bf16.gmra.mrb[0].mxu0 %v541
        %v789 = vpop.f32.mrb[0].mxu0
        %v790 = vadd.f32 0.0, %v789
        %v791 = vpop.f32.mrb[0].mxu0
        %v792 = vpop.f32.mrb[0].mxu0
        %v793 = vadd.f32 0.0, %v792
        %v794 = vpop.f32.mrb[0].mxu0
        %795 = vmatprep.mubr.bf16.mxu0 %v544
        %796 = vmatmul.mubr.bf16.gmra.mrb[0].mxu0 %v543
        %v797 = vpop.f32.mrb[0].mxu0
        %v798 = vadd.f32 0.0, %v797
        %v799 = vpop.f32.mrb[0].mxu0
        %v800 = vpop.f32.mrb[0].mxu0
        %v801 = vadd.f32 0.0, %v800
        %v802 = vpop.f32.mrb[0].mxu0
        %803 = vmatprep.mubr.bf16.mxu0 %v546
        %804 = vmatmul.mubr.bf16.gmra.mrb[0].mxu0 %v545
        %v805 = vpop.f32.mrb[0].mxu0
        %v806 = vadd.f32 0.0, %v805
        %v807 = vpop.f32.mrb[0].mxu0
        %v808 = vpop.f32.mrb[0].mxu0
        %v809 = vadd.f32 0.0, %v808
        %v810 = vpop.f32.mrb[0].mxu0
        %811 = vmatprep.mubr.bf16.mxu0 %v548
        %812 = vmatmul.mubr.bf16.gmra.mrb[0].mxu0 %v547
        %v813 = vpop.f32.mrb[0].mxu0
        %v814 = vadd.f32 0.0, %v813
        %v815 = vpop.f32.mrb[0].mxu0
        %v816 = vpop.f32.mrb[0].mxu0
        %v817 = vadd.f32 0.0, %v816
        %v818 = vpop.f32.mrb[0].mxu0
        %819 = vmatprep.mubr.bf16.mxu0 %v550
        %820 = vmatmul.mubr.bf16.gmra.mrb[0].mxu0 %v549
        %v821 = vpop.f32.mrb[0].mxu0
        %v822 = vadd.f32 0.0, %v821
        %v823 = vpop.f32.mrb[0].mxu0
        %v824 = vpop.f32.mrb[0].mxu0
        %v825 = vadd.f32 0.0, %v824
        %v826 = vpop.f32.mrb[0].mxu0
        %827 = vmatprep.mubr.bf16.mxu0 %v552
        %828 = vmatmul.mubr.bf16.gmra.mrb[0].mxu0 %v551
        %v829 = vpop.f32.mrb[0].mxu0
        %v830 = vadd.f32 0.0, %v829
        %v831 = vpop.f32.mrb[0].mxu0
        %v832 = vpop.f32.mrb[0].mxu0
        %v833 = vadd.f32 0.0, %v832
        %v834 = vpop.f32.mrb[0].mxu0
        %835 = vmatprep.mubr.bf16.mxu0 %v554
        %836 = vmatmul.mubr.bf16.gmra.mrb[0].mxu0 %v553
        %v837 = vpop.f32.mrb[0].mxu0
        %v838 = vadd.f32 0.0, %v837
        %v839 = vpop.f32.mrb[0].mxu0
        %v840 = vpop.f32.mrb[0].mxu0
        %v841 = vadd.f32 0.0, %v840
        %v842 = vpop.f32.mrb[0].mxu0
        %843 = vdwg.mxu0
        %v844 = vadd.f32 %v331, %v718
        %v845 = vadd.f32 %v332, %v721
        %v846 = vadd.f32 %v333, %v726
        %v847 = vadd.f32 %v334, %v729
        %v848 = vadd.f32 %v335, %v734
        %v849 = vadd.f32 %v336, %v737
        %v850 = vadd.f32 %v337, %v742
        %v851 = vadd.f32 %v338, %v745
        %v852 = vadd.f32 %v339, %v750
        %v853 = vadd.f32 %v340, %v753
        %v854 = vadd.f32 %v341, %v758
        %v855 = vadd.f32 %v342, %v761
        %v856 = vadd.f32 %v343, %v766
        %v857 = vadd.f32 %v344, %v769
        %v858 = vadd.f32 %v345, %v774
        %v859 = vadd.f32 %v346, %v777
        %v860 = vadd.f32 %v347, %v782
        %v861 = vadd.f32 %v348, %v785
        %v862 = vadd.f32 %v349, %v790
        %v863 = vadd.f32 %v350, %v793
        %v864 = vadd.f32 %v351, %v798
        %v865 = vadd.f32 %v352, %v801
        %v866 = vadd.f32 %v353, %v806
        %v867 = vadd.f32 %v354, %v809
        %v868 = vadd.f32 %v355, %v814
        %v869 = vadd.f32 %v356, %v817
        %v870 = vadd.f32 %v357, %v822
        %v871 = vadd.f32 %v358, %v825
        %v872 = vadd.f32 %v359, %v830
        %v873 = vadd.f32 %v360, %v833
        %v874 = vadd.f32 %v361, %v838
        %v875 = vadd.f32 %v362, %v841
        %876 = vst [vmem:[#allocation2] sm:$0xff] %v844
        %877 = vst [vmem:[#allocation2 + $0x8] sm:$0xff] %v845
        %878 = vst [vmem:[#allocation2 + $0x10] sm:$0xff] %v846
        %879 = vst [vmem:[#allocation2 + $0x18] sm:$0xff] %v847
        %880 = vst [vmem:[#allocation2 + $0x20] sm:$0xff] %v848
        %881 = vst [vmem:[#allocation2 + $0x28] sm:$0xff] %v849
        %882 = vst [vmem:[#allocation2 + $0x30] sm:$0xff] %v850
        %883 = vst [vmem:[#allocation2 + $0x38] sm:$0xff] %v851
        %884 = vst [vmem:[#allocation2 + $0x40] sm:$0xff] %v852
        %885 = vst [vmem:[#allocation2 + $0x48] sm:$0xff] %v853
        %886 = vst [vmem:[#allocation2 + $0x50] sm:$0xff] %v854
        %887 = vst [vmem:[#allocation2 + $0x58] sm:$0xff] %v855
        %888 = vst [vmem:[#allocation2 + $0x60] sm:$0xff] %v856
        %889 = vst [vmem:[#allocation2 + $0x68] sm:$0xff] %v857
        %890 = vst [vmem:[#allocation2 + $0x70] sm:$0xff] %v858
        %891 = vst [vmem:[#allocation2 + $0x78] sm:$0xff] %v859
        %892 = vst [vmem:[#allocation2 + $0x80] sm:$0xff] %v860
        %893 = vst [vmem:[#allocation2 + $0x88] sm:$0xff] %v861
        %894 = vst [vmem:[#allocation2 + $0x90] sm:$0xff] %v862
        %895 = vst [vmem:[#allocation2 + $0x98] sm:$0xff] %v863
        %896 = vst [vmem:[#allocation2 + $0xa0] sm:$0xff] %v864
        %897 = vst [vmem:[#allocation2 + $0xa8] sm:$0xff] %v865
        %898 = vst [vmem:[#allocation2 + $0xb0] sm:$0xff] %v866
        %899 = vst [vmem:[#allocation2 + $0xb8] sm:$0xff] %v867
        %900 = vst [vmem:[#allocation2 + $0xc0] sm:$0xff] %v868
        %901 = vst [vmem:[#allocation2 + $0xc8] sm:$0xff] %v869
        %902 = vst [vmem:[#allocation2 + $0xd0] sm:$0xff] %v870
        %903 = vst [vmem:[#allocation2 + $0xd8] sm:$0xff] %v871
        %904 = vst [vmem:[#allocation2 + $0xe0] sm:$0xff] %v872
        %905 = vst [vmem:[#allocation2 + $0xe8] sm:$0xff] %v873
        %906 = vst [vmem:[#allocation2 + $0xf0] sm:$0xff] %v874
        %907 = vst [vmem:[#allocation2 + $0xf8] sm:$0xff] %v875
        // Predicated region
        $region41: #{tpu_custom_call.1} parent=27 // pred_check
          %p908 = pneg %p295
        $region42: #{tpu_custom_call.1} parent=27 // pred_check_branch
          %910 = sbr.rel (%p908) target = $region44
        $region43: #{tpu_custom_call.1} parent=27 // pred_region
          %v911 = vld [vmem:[#allocation2] sm:$0xff]
          %v912 = vld [vmem:[#allocation2 + $0x8] sm:$0xff]
          %v913 = vld [vmem:[#allocation2 + $0x10] sm:$0xff]
          %v914 = vld [vmem:[#allocation2 + $0x18] sm:$0xff]
          %v915 = vld [vmem:[#allocation2 + $0x20] sm:$0xff]
          %v916 = vld [vmem:[#allocation2 + $0x28] sm:$0xff]
          %v917 = vld [vmem:[#allocation2 + $0x30] sm:$0xff]
          %v918 = vld [vmem:[#allocation2 + $0x38] sm:$0xff]
          %v919 = vld [vmem:[#allocation2 + $0x40] sm:$0xff]
          %v920 = vld [vmem:[#allocation2 + $0x48] sm:$0xff]
          %v921 = vld [vmem:[#allocation2 + $0x50] sm:$0xff]
          %v922 = vld [vmem:[#allocation2 + $0x58] sm:$0xff]
          %v923 = vld [vmem:[#allocation2 + $0x60] sm:$0xff]
          %v924 = vld [vmem:[#allocation2 + $0x68] sm:$0xff]
          %v925 = vld [vmem:[#allocation2 + $0x70] sm:$0xff]
          %v926 = vld [vmem:[#allocation2 + $0x78] sm:$0xff]
          %v927 = vld [vmem:[#allocation2 + $0x80] sm:$0xff]
          %v928 = vld [vmem:[#allocation2 + $0x88] sm:$0xff]
          %v929 = vld [vmem:[#allocation2 + $0x90] sm:$0xff]
          %v930 = vld [vmem:[#allocation2 + $0x98] sm:$0xff]
          %v931 = vld [vmem:[#allocation2 + $0xa0] sm:$0xff]
          %v932 = vld [vmem:[#allocation2 + $0xa8] sm:$0xff]
          %v933 = vld [vmem:[#allocation2 + $0xb0] sm:$0xff]
          %v934 = vld [vmem:[#allocation2 + $0xb8] sm:$0xff]
          %v935 = vld [vmem:[#allocation2 + $0xc0] sm:$0xff]
          %v936 = vld [vmem:[#allocation2 + $0xc8] sm:$0xff]
          %v937 = vld [vmem:[#allocation2 + $0xd0] sm:$0xff]
          %v938 = vld [vmem:[#allocation2 + $0xd8] sm:$0xff]
          %v939 = vld [vmem:[#allocation2 + $0xe0] sm:$0xff]
          %v940 = vld [vmem:[#allocation2 + $0xe8] sm:$0xff]
          %v941 = vld [vmem:[#allocation2 + $0xf0] sm:$0xff]
          %v942 = vld [vmem:[#allocation2 + $0xf8] sm:$0xff]
          %943 = vst [vmem:[%s275] sm:$0xff] %v911
          %944 = vst [vmem:[%s275 + $0x8] sm:$0xff] %v912
          %945 = vst [vmem:[%s275 + $0x10] sm:$0xff] %v913
          %946 = vst [vmem:[%s275 + $0x18] sm:$0xff] %v914
          %947 = vst [vmem:[%s275 + $0x20] sm:$0xff] %v915
          %948 = vst [vmem:[%s275 + $0x28] sm:$0xff] %v916
          %949 = vst [vmem:[%s275 + $0x30] sm:$0xff] %v917
          %950 = vst [vmem:[%s275 + $0x38] sm:$0xff] %v918
          %951 = vst [vmem:[%s275 + $0x40] sm:$0xff] %v919
          %952 = vst [vmem:[%s275 + $0x48] sm:$0xff] %v920
          %953 = vst [vmem:[%s275 + $0x50] sm:$0xff] %v921
          %954 = vst [vmem:[%s275 + $0x58] sm:$0xff] %v922
          %955 = vst [vmem:[%s275 + $0x60] sm:$0xff] %v923
          %956 = vst [vmem:[%s275 + $0x68] sm:$0xff] %v924
          %957 = vst [vmem:[%s275 + $0x70] sm:$0xff] %v925
          %958 = vst [vmem:[%s275 + $0x78] sm:$0xff] %v926
          %959 = vst [vmem:[%s275 + $0x80] sm:$0xff] %v927
          %960 = vst [vmem:[%s275 + $0x88] sm:$0xff] %v928
          %961 = vst [vmem:[%s275 + $0x90] sm:$0xff] %v929
          %962 = vst [vmem:[%s275 + $0x98] sm:$0xff] %v930
          %963 = vst [vmem:[%s275 + $0xa0] sm:$0xff] %v931
          %964 = vst [vmem:[%s275 + $0xa8] sm:$0xff] %v932
          %965 = vst [vmem:[%s275 + $0xb0] sm:$0xff] %v933
          %966 = vst [vmem:[%s275 + $0xb8] sm:$0xff] %v934
          %967 = vst [vmem:[%s275 + $0xc0] sm:$0xff] %v935
          %968 = vst [vmem:[%s275 + $0xc8] sm:$0xff] %v936
          %969 = vst [vmem:[%s275 + $0xd0] sm:$0xff] %v937
          %970 = vst [vmem:[%s275 + $0xd8] sm:$0xff] %v938
          %971 = vst [vmem:[%s275 + $0xe0] sm:$0xff] %v939
          %972 = vst [vmem:[%s275 + $0xe8] sm:$0xff] %v940
          %973 = vst [vmem:[%s275 + $0xf0] sm:$0xff] %v941
          %974 = vst [vmem:[%s275 + $0xf8] sm:$0xff] %v942
          %v975 = vadd.f32 %v911, %v912
          %v976 = vadd.f32 %v975, %v913
          %v977 = vadd.f32 %v976, %v914
          %v978 = vadd.f32 %v977, %v915
          %v979 = vadd.f32 %v978, %v916
          %v980 = vadd.f32 %v979, %v917
          %v981 = vadd.f32 %v980, %v918
          %v982 = vadd.f32 %v981, %v919
          %v983 = vadd.f32 %v982, %v920
          %v984 = vadd.f32 %v983, %v921
          %v985 = vadd.f32 %v984, %v922
          %v986 = vadd.f32 %v985, %v923
          %v987 = vadd.f32 %v986, %v924
          %v988 = vadd.f32 %v987, %v925
          %v989 = vadd.f32 %v988, %v926
          %v990 = vadd.f32 %v989, %v927
          %v991 = vadd.f32 %v990, %v928
          %v992 = vadd.f32 %v991, %v929
          %v993 = vadd.f32 %v992, %v930
          %v994 = vadd.f32 %v993, %v931
          %v995 = vadd.f32 %v994, %v932
          %v996 = vadd.f32 %v995, %v933
          %v997 = vadd.f32 %v996, %v934
          %v998 = vadd.f32 %v997, %v935
          %v999 = vadd.f32 %v998, %v936
          %v1000 = vadd.f32 %v999, %v937
          %v1001 = vadd.f32 %v1000, %v938
          %v1002 = vadd.f32 %v1001, %v939
          %v1003 = vadd.f32 %v1002, %v940
          %v1004 = vadd.f32 %v1003, %v941
          %v1005 = vadd.f32 %v1004, %v942
          %v1006 = vrot.slane %v1005, 4
          %v1007 = vadd.f32 %v1005, %v1006
          %v1008 = vrot.slane %v1007, 2
          %v1009 = vadd.f32 %v1007, %v1008
          %v1010 = vrot.slane %v1009, 1
          %v1011 = vadd.f32 %v1009, %v1010
          %v1012 = vmul.f32 %v911, %v911
          %v1013 = vmul.f32 %v912, %v912
          %v1014 = vmul.f32 %v913, %v913
          %v1015 = vmul.f32 %v914, %v914
          %v1016 = vmul.f32 %v915, %v915
          %v1017 = vmul.f32 %v916, %v916
          %v1018 = vmul.f32 %v917, %v917
          %v1019 = vmul.f32 %v918, %v918
          %v1020 = vmul.f32 %v919, %v919
          %v1021 = vmul.f32 %v920, %v920
          %v1022 = vmul.f32 %v921, %v921
          %v1023 = vmul.f32 %v922, %v922
          %v1024 = vmul.f32 %v923, %v923
          %v1025 = vmul.f32 %v924, %v924
          %v1026 = vmul.f32 %v925, %v925
          %v1027 = vmul.f32 %v926, %v926
          %v1028 = vmul.f32 %v927, %v927
          %v1029 = vmul.f32 %v928, %v928
          %v1030 = vmul.f32 %v929, %v929
          %v1031 = vmul.f32 %v930, %v930
          %v1032 = vmul.f32 %v931, %v931
          %v1033 = vmul.f32 %v932, %v932
          %v1034 = vmul.f32 %v933, %v933
          %v1035 = vmul.f32 %v934, %v934
          %v1036 = vmul.f32 %v935, %v935
          %v1037 = vmul.f32 %v936, %v936
          %v1038 = vmul.f32 %v937, %v937
          %v1039 = vmul.f32 %v938, %v938
          %v1040 = vmul.f32 %v939, %v939
          %v1041 = vmul.f32 %v940, %v940
          %v1042 = vmul.f32 %v941, %v941
          %v1043 = vmul.f32 %v942, %v942
          %v1044 = vadd.f32 %v1012, %v1013
          %v1045 = vadd.f32 %v1044, %v1014
          %v1046 = vadd.f32 %v1045, %v1015
          %v1047 = vadd.f32 %v1046, %v1016
          %v1048 = vadd.f32 %v1047, %v1017
          %v1049 = vadd.f32 %v1048, %v1018
          %v1050 = vadd.f32 %v1049, %v1019
          %v1051 = vadd.f32 %v1050, %v1020
          %v1052 = vadd.f32 %v1051, %v1021
          %v1053 = vadd.f32 %v1052, %v1022
          %v1054 = vadd.f32 %v1053, %v1023
          %v1055 = vadd.f32 %v1054, %v1024
          %v1056 = vadd.f32 %v1055, %v1025
          %v1057 = vadd.f32 %v1056, %v1026
          %v1058 = vadd.f32 %v1057, %v1027
          %v1059 = vadd.f32 %v1058, %v1028
          %v1060 = vadd.f32 %v1059, %v1029
          %v1061 = vadd.f32 %v1060, %v1030
          %v1062 = vadd.f32 %v1061, %v1031
          %v1063 = vadd.f32 %v1062, %v1032
          %v1064 = vadd.f32 %v1063, %v1033
          %v1065 = vadd.f32 %v1064, %v1034
          %v1066 = vadd.f32 %v1065, %v1035
          %v1067 = vadd.f32 %v1066, %v1036
          %v1068 = vadd.f32 %v1067, %v1037
          %v1069 = vadd.f32 %v1068, %v1038
          %v1070 = vadd.f32 %v1069, %v1039
          %v1071 = vadd.f32 %v1070, %v1040
          %v1072 = vadd.f32 %v1071, %v1041
          %v1073 = vadd.f32 %v1072, %v1042
          %v1074 = vadd.f32 %v1073, %v1043
          %v1075 = vrot.slane %v1074, 4
          %v1076 = vadd.f32 %v1074, %v1075
          %v1077 = vrot.slane %v1076, 2
          %v1078 = vadd.f32 %v1076, %v1077
          %v1079 = vrot.slane %v1078, 1
          %v1080 = vadd.f32 %v1078, %v1079
          %1081 = vst [vmem:[%s282] sm:$0xff] %v1011
          %1082 = vst [vmem:[%s289] sm:$0xff] %v1080
        $region44: #{tpu_custom_call.1} parent=27 // pred_fallthru
          _
        %s1083 = sand.u32 %s111, 1
        %s1084 = scalar_lea.sflag [#allocation5], %s1083
        %s1085 = sand.u32 %s111, 1
        %s1086 = smul.addr %s1085, 256
        %s1087 = scalar_lea.vmem [#allocation8], %s1086
        %s1088 = sand.u32 %s26, 1
        %s1089 = scalar_lea.sflag [#allocation10], %s1088
        %s1090 = sand.u32 %s139, 1
        %s1091 = smul.addr %s1090, 8
        %s1092 = scalar_lea.vmem [#allocation9], %s1091
        %s1093 = sand.u32 %s26, 1
        %s1094 = scalar_lea.sflag [#allocation10], %s1093
        %s1095 = sand.u32 %s167, 1
        %s1096 = smul.addr %s1095, 8
        %s1097 = scalar_lea.vmem [#allocation11], %s1096
        // Predicated region
        $region45: #{tpu_custom_call.1} parent=27 // pred_check
          %p1098 = pneg %p121
        $region46: #{tpu_custom_call.1} parent=27 // pred_check_branch
          %1100 = sbr.rel (%p1098) target = $region48
        $region47: #{tpu_custom_call.1} parent=27 // pred_region
          %s1101 = smul.u32 32, %s31
          %s1103 = ssub.s32 4096, 4096
          %1104 = vsyncadd %s1084, %s1103
          %s1105 = sadd.s32 %s32, %s1101
          %s1106 = smul.addr %s1105, 128
          %s1107 = scalar_lea.hbm %s2, %s1106
          %s1108 = sshll.u32 %s1087, 4
          %s1109 = int_to_ptr.vmem [resolvable:$true] %s1108
          %1114 = dma.vmem_to_hbm [thread:$0]  %s1109, 4096, %s1107, %s1084, 128, 128, 8
        $region48: #{tpu_custom_call.1} parent=27 // pred_fallthru
          _
        // Predicated region
        $region49: #{tpu_custom_call.1} parent=27 // pred_check
          %p1115 = pneg %p149
        $region50: #{tpu_custom_call.1} parent=27 // pred_check_branch
          %1117 = sbr.rel (%p1115) target = $region52
        $region51: #{tpu_custom_call.1} parent=27 // pred_region
          %s1119 = ssub.s32 128, 128
          %1120 = vsyncadd %s1089, %s1119
          %s1121 = sadd.s32 %s32, %s31
          %s1122 = smul.addr %s1121, 128
          %s1123 = scalar_lea.hbm %s3, %s1122
          %s1125 = sshll.u32 %s1092, 4
          %s1126 = int_to_ptr.vmem [resolvable:$true] %s1125
          %1128 = dma.vmem_to_hbm [thread:$0]  %s1126, 128, %s1123, %s1089
        $region52: #{tpu_custom_call.1} parent=27 // pred_fallthru
          _
        // Predicated region
        $region53: #{tpu_custom_call.1} parent=27 // pred_check
          %p1129 = pneg %p177
        $region54: #{tpu_custom_call.1} parent=27 // pred_check_branch
          %1131 = sbr.rel (%p1129) target = $region56
        $region55: #{tpu_custom_call.1} parent=27 // pred_region
          %s1133 = ssub.s32 128, 128
          %1134 = vsyncadd %s1094, %s1133
          %s1135 = sadd.s32 %s32, %s31
          %s1136 = smul.addr %s1135, 128
          %s1137 = scalar_lea.hbm %s4, %s1136
          %s1139 = sshll.u32 %s1097, 4
          %s1140 = int_to_ptr.vmem [resolvable:$true] %s1139
          %1142 = dma.vmem_to_hbm [thread:$0]  %s1140, 128, %s1137, %s1094
        $region56: #{tpu_custom_call.1} parent=27 // pred_fallthru
          _
      $region28: #{tpu_custom_call.1} parent=5 // pred_fallthru
        _
      %p1143 = scmp.le.s32.totalorder 2, %s21
      // Predicated region
      $region57: #{tpu_custom_call.1} parent=5 // pred_check
        %p1144 = pneg %p1143
      $region58: #{tpu_custom_call.1} parent=5 // pred_check_branch
        %1146 = sbr.rel (%p1144) target = $region60
      $region59: #{tpu_custom_call.1} parent=5 // pred_region
        %s1147 = ssub.s32 %s21, 2
        // Predicated region
        $region61: #{tpu_custom_call.1} parent=59 // pred_check
          %p1148 = pneg %p127
        $region62: #{tpu_custom_call.1} parent=59 // pred_check_branch
          %1150 = sbr.rel (%p1148) target = $region64
        $region63: #{tpu_custom_call.1} parent=59 // pred_region
          %s1151 = sand.u32 %s112, 1
          %s1152 = scalar_lea.sflag [#allocation5], %s1151
          %s1153 = sand.u32 %s112, 1
          %s1154 = smul.addr %s1153, 256
          %s1155 = scalar_lea.vmem [#allocation8], %s1154
          %1156 = dma.done %s1152, 4096
        $region64: #{tpu_custom_call.1} parent=59 // pred_fallthru
          _
        // Predicated region
        $region65: #{tpu_custom_call.1} parent=59 // pred_check
          %p1157 = pneg %p155
        $region66: #{tpu_custom_call.1} parent=59 // pred_check_branch
          %1159 = sbr.rel (%p1157) target = $region68
        $region67: #{tpu_custom_call.1} parent=59 // pred_region
          %s1160 = sand.u32 %s27, 1
          %s1161 = scalar_lea.sflag [#allocation10], %s1160
          %s1162 = sand.u32 %s140, 1
          %s1163 = smul.addr %s1162, 8
          %s1164 = scalar_lea.vmem [#allocation9], %s1163
          %1165 = dma.done %s1161, 128
        $region68: #{tpu_custom_call.1} parent=59 // pred_fallthru
          _
        // Predicated region
        $region69: #{tpu_custom_call.1} parent=59 // pred_check
          %p1166 = pneg %p183
        $region70: #{tpu_custom_call.1} parent=59 // pred_check_branch
          %1168 = sbr.rel (%p1166) target = $region72
        $region71: #{tpu_custom_call.1} parent=59 // pred_region
          %s1169 = sand.u32 %s27, 1
          %s1170 = scalar_lea.sflag [#allocation10], %s1169
          %s1171 = sand.u32 %s168, 1
          %s1172 = smul.addr %s1171, 8
          %s1173 = scalar_lea.vmem [#allocation11], %s1172
          %1174 = dma.done %s1170, 128
        $region72: #{tpu_custom_call.1} parent=59 // pred_fallthru
          _
      $region60: #{tpu_custom_call.1} parent=5 // pred_fallthru
        _
    $region6: #{tpu_custom_call.1} parent=1 // loop_footer
      %s25 = sadd.s32 1, %s21
    $region7: #{tpu_custom_call.1} parent=1 // loop_footer_branch
      %20 = sbr.rel target = $region3
    $region8: #{tpu_custom_call.1} parent=1 // loop_exit
      _
    %1175 = vsyncpa [#allocation4], 1
    %s1176 = scalar_lea.sflag [#allocation4], 1
    %1177 = vsyncpa %s1176, 1
    %1178 = vsyncpa [#allocation7], 1
    %1179 = vsyncpa [#allocation5], 1
    %s1180 = scalar_lea.sflag [#allocation5], 1
    %1181 = vsyncpa %s1180, 1
    %1182 = vsyncpa [#allocation10], 1
    %s1183 = scalar_lea.sflag [#allocation10], 1
    %1184 = vsyncpa %s1183, 1

</llo_original>
